<compile_context>
chip_gen: v7x
topology: tpu7x:2x2x1
jax: 0.10.0
libtpu: 0.0.40
codegen_flags: <defaults>
</compile_context>

<pallas_src>
import functools

import jax
import jax.numpy as jnp
from jax.experimental import pallas as pl
from jax.experimental.pallas import tpu as pltpu


def _round_up(x, m):
    return ((x + m - 1) // m) * m


# -----------------------------------------------------------------------------
# Plain-JAX glue: furthest point sampling + ball query (data dependent indices)
# -----------------------------------------------------------------------------
def furthest_point_sample(coords, num_centers):
    """coords: (B, 3, N) -> centers_coords (B, 3, num_centers). Matches PVCNN CUDA FPS (start at index 0)."""
    B, _, N = coords.shape
    pts = jnp.transpose(coords, (0, 2, 1))  # (B, N, 3)

    def body(carry, _):
        dists, last_idx = carry
        last = jnp.take_along_axis(pts, last_idx[:, None, None], axis=1)  # (B, 1, 3)
        d = jnp.sum((pts - last) ** 2, axis=-1)                           # (B, N)
        dists = jnp.minimum(dists, d)
        nxt = jnp.argmax(dists, axis=-1).astype(jnp.int32)
        return (dists, nxt), nxt

    init_idx = jnp.zeros((B,), jnp.int32)
    dists0 = jnp.full((B, N), 1e10, jnp.float32)
    (_, _), rest = jax.lax.scan(body, (dists0, init_idx), None, length=num_centers - 1)
    idxs = jnp.concatenate([init_idx[None, :], rest], axis=0)     # (M, B)
    idxs = jnp.transpose(idxs)                                    # (B, M)
    centers = jnp.take_along_axis(pts, idxs[..., None], axis=1)   # (B, M, 3)
    return jnp.transpose(centers, (0, 2, 1))                      # (B, 3, M)


def ball_query_indices(centers_coords, coords, radius, num_neighbors):
    """centers (B,3,M), coords (B,3,N) -> neighbor indices (B, M, K).
    Matches PVCNN CUDA ball_query: slot k holds the k-th in-ball point (index order);
    if fewer than K points are in the ball the first in-ball point fills the rest; 0 if empty.
    Uses lax.top_k partial selection instead of a full stable argsort over N."""
    c = jnp.transpose(centers_coords, (0, 2, 1))  # (B, M, 3)
    p = jnp.transpose(coords, (0, 2, 1))          # (B, N, 3)
    N = p.shape[1]
    d2 = jnp.sum((c[:, :, None, :] - p[:, None, :, :]) ** 2, axis=-1)  # (B, M, N)
    mask = d2 < (radius * radius)
    total = jnp.sum(mask.astype(jnp.int32), axis=-1)                   # (B, M)
    arange = jnp.arange(N, dtype=jnp.int32)
    # in-ball points get descending score by index -> top-k = first K in-ball points in index order
    score = jnp.where(mask, N - arange, -1)                            # (B, M, N) int32
    _, idx_k = jax.lax.top_k(score, num_neighbors)                     # (B, M, K)
    idx_k = idx_k.astype(jnp.int32)
    first_idx = idx_k[..., :1]                                         # smallest in-ball index
    ks = jnp.arange(num_neighbors, dtype=jnp.int32)
    idx = jnp.where(total[..., None] > ks[None, None, :], idx_k,
                    jnp.where(total[..., None] > 0, first_idx, 0))
    return idx.astype(jnp.int32)


def group_neighbors(coords, centers_coords, features, idx, include_coordinates=True,
                    pad_channels_to=8):
    """Gather neighbors into the kernel-friendly layout (B, K, C0p, M).
    Channels = [rel_coords(3 if include), features(D), ones(1), zero-pad...] with C0p a multiple of 8.
    The ones channel carries layer-1's folded conv-bias/BN shift."""
    B, _, N = coords.shape
    M, K = idx.shape[1], idx.shape[2]
    idx_km = jnp.transpose(idx, (0, 2, 1)).reshape(B, 1, K * M)        # (B, 1, K*M)

    def gather_cf(arr):  # (B, C, N) -> (B, K, C, M)
        C = arr.shape[1]
        flat = jnp.broadcast_to(idx_km, (B, C, K * M))
        g = jnp.take_along_axis(arr, flat, axis=2)                     # (B, C, K*M)
        return jnp.transpose(g.reshape(B, C, K, M), (0, 2, 1, 3))      # (B, K, C, M)

    parts = []
    if include_coordinates:
        nb_coords = gather_cf(coords)                                  # (B, K, 3, M)
        parts.append(nb_coords - centers_coords[:, None, :, :])        # relative to center
    parts.append(gather_cf(features))                                  # (B, K, D, M)
    parts.append(jnp.ones((B, K, 1, M), features.dtype))               # ones channel (folds layer-1 shift)
    c0 = sum(p.shape[2] for p in parts)
    c0p = _round_up(c0, pad_channels_to)
    if c0p > c0:
        parts.append(jnp.zeros((B, K, c0p - c0, M), features.dtype))   # zero pad (zero weight columns)
    return jnp.concatenate(parts, axis=2)                              # (B, K, C0p, M)


# -----------------------------------------------------------------------------
# Pallas kernel: SharedMLP (1x1 conv + folded BN) x L, ReLU, max over K neighbors
# -----------------------------------------------------------------------------
def _make_sa_mlp_kernel(num_layers):
    n_param = 2 * num_layers - 1  # w0, (w1, t1), (w2, t2), ...  (layer-0 shift folded via ones channel)

    def kernel(*refs):
        x_ref = refs[0]                         # (1, K, C0p, TILE_M) bf16
        param_refs = refs[1:1 + n_param]
        out_ref = refs[1 + n_param]             # (1, C_out, TILE_M)
        xw_ref = refs[2 + n_param]              # VMEM scratch (C0p, K*TILE_M) bf16

        K = x_ref.shape[1]
        tile_m = x_ref.shape[-1]

        # Assemble the wide operand: lane-concatenate the K neighbor slabs (static 128-aligned slices).
        for k in range(K):
            xw_ref[:, k * tile_m:(k + 1) * tile_m] = x_ref[0, k]

        # Layer 1: shift is folded into the ones-channel weight column.
        w0 = param_refs[0][...]
        h = jnp.dot(w0, xw_ref[...], preferred_element_type=jnp.float32)   # (C1, K*TILE_M) f32
        h = jnp.maximum(h, 0.0)

        # Layers 2..L: BN-scale-folded weight + shift vector, ReLU.
        for i in range(1, num_layers):
            w = param_refs[2 * i - 1][...]       # (C_i, C_{i-1}) bf16
            t = param_refs[2 * i][...]           # (C_i, 1) f32
            h = jnp.dot(w, h.astype(w.dtype), preferred_element_type=jnp.float32)
            h = jnp.maximum(h + t, 0.0)

        # Max over neighbors with static lane-aligned slices of the wide result.
        res = h[:, :tile_m]
        for k in range(1, K):
            res = jnp.maximum(res, h[:, k * tile_m:(k + 1) * tile_m])
        out_ref[0] = res.astype(out_ref.dtype)   # (C_out, TILE_M) lane-dense store

    return kernel


def _pick_tile_m(m_pad, batch, k, c0p, layer_cout, out_bytes, vmem_budget=12 * 1024 * 1024):
    """Largest multiple-of-128 tile dividing m_pad that fits a conservative VMEM budget."""
    per_col = 2 * 2 * k * c0p                        # bf16 input block, double-buffered
    per_col += 2 * out_bytes * layer_cout[-1]        # output block, double-buffered
    per_col += 2 * k * c0p                           # assembled bf16 wide operand (scratch)
    per_col += sum(4 * k * c for c in layer_cout)    # f32 wide intermediates
    cap = max(128, min(1024, (vmem_budget // per_col) // 128 * 128))
    tile = 128
    for t in range(128, cap + 1, 128):
        if m_pad % t == 0:
            tile = t
    # Keep >= 2 total grid steps so v7x's second TensorCore isn't idle.
    if batch * (m_pad // tile) < 2 and tile > 128:
        for t in range(tile - 128, 127, -128):
            if m_pad % t == 0 and batch * (m_pad // t) >= 2:
                tile = t
                break
    return tile


def sa_mlp_pallas(grouped, folded_params, out_dtype=jnp.float32):
    """grouped: (B, K, C0p, M_pad) bf16 -> (B, C_out, M_pad) in PyTorch layout (no wrapper transpose)."""
    B, K, C0p, Mp = grouped.shape
    num_layers = len(folded_params)
    assert folded_params[0][0].shape[1] == C0p, "weight Cin must match padded grouped channels"
    layer_cout = [w.shape[0] for (w, _) in folded_params]
    c_out = layer_cout[-1]
    out_bytes = jnp.dtype(out_dtype).itemsize
    tile_m = _pick_tile_m(Mp, B, K, C0p, layer_cout, out_bytes)

    in_specs = [pl.BlockSpec((1, K, C0p, tile_m), lambda b, mt: (b, 0, 0, mt))]
    args = [grouped]
    flops = 0
    weight_bytes = 0
    for w, t in folded_params:
        co, ci = w.shape
        in_specs.append(pl.BlockSpec((co, ci), lambda b, mt: (0, 0)))    # VMEM-resident weights
        args.append(w)
        weight_bytes += w.size * w.dtype.itemsize
        if t is not None:
            in_specs.append(pl.BlockSpec((co, 1), lambda b, mt: (0, 0)))  # VMEM-resident shifts
            args.append(t)
            weight_bytes += t.size * t.dtype.itemsize
        flops += 2 * B * Mp * K * ci * co

    out_specs = pl.BlockSpec((1, c_out, tile_m), lambda b, mt: (b, 0, mt))
    bytes_accessed = (grouped.size * grouped.dtype.itemsize
                      + B * c_out * Mp * out_bytes
                      + weight_bytes)

    return pl.pallas_call(
        _make_sa_mlp_kernel(num_layers),
        out_shape=jax.ShapeDtypeStruct((B, c_out, Mp), out_dtype),
        grid=(B, Mp // tile_m),
        in_specs=in_specs,
        out_specs=out_specs,
        scratch_shapes=[pltpu.VMEM((C0p, K * tile_m), grouped.dtype)],
        compiler_params=pltpu.CompilerParams(
            dimension_semantics=("parallel", "parallel")),
        cost_estimate=pl.CostEstimate(
            flops=int(flops), transcendentals=0, bytes_accessed=int(bytes_accessed)),
    )(*args)


# -----------------------------------------------------------------------------
# Parameters: Conv2d(1x1) + BatchNorm2d (eval mode), BN fully folded for the kernel
# -----------------------------------------------------------------------------
def init_shared_mlp_params(key, in_channels, out_channels):
    """Per layer: (W (Cin,Cout), scale (1,Cout), shift (1,Cout)) with BN folded into scale/shift."""
    params = []
    c_in = in_channels
    eps = 1e-5
    for c_out in out_channels:
        key, k_w, k_b, k_g, k_beta, k_mu, k_var = jax.random.split(key, 7)
        W = jax.random.normal(k_w, (c_in, c_out), jnp.float32) * 0.1          # conv weight (Cin x Cout)
        b = jax.random.normal(k_b, (c_out,), jnp.float32) * 0.05              # conv bias
        gamma = 1.0 + 0.1 * jax.random.normal(k_g, (c_out,), jnp.float32)     # BN weight
        beta = 0.05 * jax.random.normal(k_beta, (c_out,), jnp.float32)        # BN bias
        mu = 0.05 * jax.random.normal(k_mu, (c_out,), jnp.float32)            # BN running_mean
        var = 1.0 + 0.1 * jax.random.uniform(k_var, (c_out,), jnp.float32)    # BN running_var
        scale = gamma / jnp.sqrt(var + eps)
        shift = (b - mu) * scale + beta
        params.append((W, scale[None, :], shift[None, :]))
        c_in = c_out
    return params


def fold_bn_params(params, c0_padded, weight_dtype=jnp.bfloat16):
    """Fold BN scale into the weights; transpose to (Cout, Cin) kernel layout.
    Layer 1: shift folded into an extra weight column (matched by the ones channel in `grouped`),
    Cin zero-padded to c0_padded.  Layers >= 2: (W^T*scale, shift (Cout,1) f32)."""
    folded = []
    for li, (W, scale, shift) in enumerate(params):
        wt = jnp.transpose(W * scale)                          # (Cout, Cin), BN scale folded
        sh = shift.reshape(-1)                                 # (Cout,)
        if li == 0:
            co, ci = wt.shape
            assert ci + 1 <= c0_padded
            w0 = jnp.zeros((co, c0_padded), jnp.float32)
            w0 = w0.at[:, :ci].set(wt)
            w0 = w0.at[:, ci].set(sh)                          # shift via the ones channel
            folded.append((w0.astype(weight_dtype), None))
        else:
            folded.append((wt.astype(weight_dtype), sh.reshape(-1, 1).astype(jnp.float32)))
    return folded


# -----------------------------------------------------------------------------
# Module forward
# -----------------------------------------------------------------------------
@functools.partial(jax.jit, static_argnames=("num_centers", "radius", "num_neighbors", "include_coordinates"))
def pointnet_sa_module_forward(features, coords, condition, folded_params,
                               num_centers, radius, num_neighbors, include_coordinates=True):
    """
    features: (B, D, N), coords: (B, 3, N), condition: (B, Dc)
    Returns: (out_features (B, C_out, num_centers), centers_coords (B, 3, num_centers), condition)
    """
    M = num_centers
    centers_coords = furthest_point_sample(coords, M)                             # (B, 3, M)
    idx = ball_query_indices(centers_coords, coords, radius, num_neighbors)       # (B, M, K)

    # Pad centers to a multiple of 128 so every output tile is a full lane-dense store.
    m_pad = _round_up(M, 128)
    if m_pad > M:
        centers_p = jnp.pad(centers_coords, ((0, 0), (0, 0), (0, m_pad - M)))
        idx_p = jnp.pad(idx, ((0, 0), (0, m_pad - M), (0, 0)))
    else:
        centers_p, idx_p = centers_coords, idx

    grouped = group_neighbors(coords, centers_p, features, idx_p,
                              include_coordinates=include_coordinates)            # (B, K, C0p, M_pad)
    out = sa_mlp_pallas(grouped.astype(jnp.bfloat16), folded_params)              # (B, C_out, M_pad)
    return out[:, :, :M], centers_coords, condition


if __name__ == "__main__":
    # Small, module-consistent shapes
    B, D, N = 2, 4, 16          # features (B, D, N), coords (B, 3, N)
    num_centers = 8
    radius = 0.5
    num_neighbors = 8
    out_channels = [32, 64]     # SharedMLP channels; total out = 64
    Dc = 16                     # conditioning dim (passed through; c_dim = -1 -> no adaGN)

    key = jax.random.PRNGKey(0)
    k_feat, k_coord, k_cond, k_param = jax.random.split(key, 4)
    features = jax.random.normal(k_feat, (B, D, N), jnp.float32)
    coords = jax.random.uniform(k_coord, (B, 3, N), jnp.float32)
    condition = jax.random.normal(k_cond, (B, Dc), jnp.float32)

    in_channels_mlp = D + 3                       # include_coordinates=True
    c0p = _round_up(in_channels_mlp + 1, 8)       # +1 for the ones channel
    params = init_shared_mlp_params(k_param, in_channels_mlp, out_channels)
    folded_params = fold_bn_params(params, c0p)

    out_feats, centers, cond_out = pointnet_sa_module_forward(
        features, coords, condition, folded_params,
        num_centers=num_centers, radius=radius, num_neighbors=num_neighbors,
        include_coordinates=True)

    jax.block_until_ready(out_feats)
    jax.block_until_ready(centers)

    assert out_feats.shape == (B, out_channels[-1], num_centers)
    assert centers.shape == (B, 3, num_centers)
    assert cond_out.shape == (B, Dc)
    assert bool(jnp.all(jnp.isfinite(out_feats)))
    print("KERNEL_OK")
</pallas_src>

<mosaic_0001>
module attributes {stable_mosaic.version = 11 : i64} {
  func.func @kernel(%arg0: i32, %arg1: i32, %arg2: memref<1x8x8x128xbf16, #tpu.memory_space<vmem>>, %arg3: memref<32x8xbf16, #tpu.memory_space<vmem>>, %arg4: memref<64x32xbf16, #tpu.memory_space<vmem>>, %arg5: memref<64x1xf32, #tpu.memory_space<vmem>>, %arg6: memref<1x64x128xf32, #tpu.memory_space<vmem>>, %arg7: memref<8x1024xbf16, #tpu.memory_space<vmem>>) attributes {dimension_semantics = [#tpu.dimension_semantics<parallel>, #tpu.dimension_semantics<parallel>], iteration_bounds = array<i64: 2, 1>, scalar_prefetch = 0 : i64, scratch_operands = 1 : i64, tpu.core_type = #tpu.core_type<tc>, window_params = [{transform_indices = @transform_0, window_bounds = array<i64: 1, 8, 8, 128>}, {pipeline_mode = #tpu.pipeline_mode<synchronous>, transform_indices = @transform_1, window_bounds = array<i64: 32, 8>}, {pipeline_mode = #tpu.pipeline_mode<synchronous>, transform_indices = @transform_2, window_bounds = array<i64: 64, 32>}, {pipeline_mode = #tpu.pipeline_mode<synchronous>, transform_indices = @transform_3, window_bounds = array<i64: 64, 1>}, {transform_indices = @transform_4, window_bounds = array<i64: 1, 64, 128>}]} {
    %c0 = arith.constant 0 : index
    %c0_0 = arith.constant 0 : index
    %c0_1 = arith.constant 0 : index
    %c0_2 = arith.constant 0 : index
    %0 = vector.load %arg2[%c0, %c0_0, %c0_1, %c0_2] : memref<1x8x8x128xbf16, #tpu.memory_space<vmem>>, vector<1x1x8x128xbf16>
    %1 = vector.shape_cast %0 : vector<1x1x8x128xbf16> to vector<8x128xbf16>
    %c0_3 = arith.constant 0 : index
    %c0_4 = arith.constant 0 : index
    %2 = vector.load %arg7[%c0_3, %c0_4] : memref<8x1024xbf16, #tpu.memory_space<vmem>>, vector<8x128xbf16>
    tpu.vector_store %arg7[%c0_3, %c0_4], %1 {strides = array<i32>} : memref<8x1024xbf16, #tpu.memory_space<vmem>>, vector<8x128xbf16>,
    %c0_5 = arith.constant 0 : index
    %c1 = arith.constant 1 : index
    %c0_6 = arith.constant 0 : index
    %c0_7 = arith.constant 0 : index
    %3 = vector.load %arg2[%c0_5, %c1, %c0_6, %c0_7] : memref<1x8x8x128xbf16, #tpu.memory_space<vmem>>, vector<1x1x8x128xbf16>
    %4 = vector.shape_cast %3 : vector<1x1x8x128xbf16> to vector<8x128xbf16>
    %c0_8 = arith.constant 0 : index
    %c128 = arith.constant 128 : index
    %5 = vector.load %arg7[%c0_8, %c128] : memref<8x1024xbf16, #tpu.memory_space<vmem>>, vector<8x128xbf16>
    tpu.vector_store %arg7[%c0_8, %c128], %4 {strides = array<i32>} : memref<8x1024xbf16, #tpu.memory_space<vmem>>, vector<8x128xbf16>,
    %c0_9 = arith.constant 0 : index
    %c2 = arith.constant 2 : index
    %c0_10 = arith.constant 0 : index
    %c0_11 = arith.constant 0 : index
    %6 = vector.load %arg2[%c0_9, %c2, %c0_10, %c0_11] : memref<1x8x8x128xbf16, #tpu.memory_space<vmem>>, vector<1x1x8x128xbf16>
    %7 = vector.shape_cast %6 : vector<1x1x8x128xbf16> to vector<8x128xbf16>
    %c0_12 = arith.constant 0 : index
    %c256 = arith.constant 256 : index
    %8 = vector.load %arg7[%c0_12, %c256] : memref<8x1024xbf16, #tpu.memory_space<vmem>>, vector<8x128xbf16>
    tpu.vector_store %arg7[%c0_12, %c256], %7 {strides = array<i32>} : memref<8x1024xbf16, #tpu.memory_space<vmem>>, vector<8x128xbf16>,
    %c0_13 = arith.constant 0 : index
    %c3 = arith.constant 3 : index
    %c0_14 = arith.constant 0 : index
    %c0_15 = arith.constant 0 : index
    %9 = vector.load %arg2[%c0_13, %c3, %c0_14, %c0_15] : memref<1x8x8x128xbf16, #tpu.memory_space<vmem>>, vector<1x1x8x128xbf16>
    %10 = vector.shape_cast %9 : vector<1x1x8x128xbf16> to vector<8x128xbf16>
    %c0_16 = arith.constant 0 : index
    %c384 = arith.constant 384 : index
    %11 = vector.load %arg7[%c0_16, %c384] : memref<8x1024xbf16, #tpu.memory_space<vmem>>, vector<8x128xbf16>
    tpu.vector_store %arg7[%c0_16, %c384], %10 {strides = array<i32>} : memref<8x1024xbf16, #tpu.memory_space<vmem>>, vector<8x128xbf16>,
    %c0_17 = arith.constant 0 : index
    %c4 = arith.constant 4 : index
    %c0_18 = arith.constant 0 : index
    %c0_19 = arith.constant 0 : index
    %12 = vector.load %arg2[%c0_17, %c4, %c0_18, %c0_19] : memref<1x8x8x128xbf16, #tpu.memory_space<vmem>>, vector<1x1x8x128xbf16>
    %13 = vector.shape_cast %12 : vector<1x1x8x128xbf16> to vector<8x128xbf16>
    %c0_20 = arith.constant 0 : index
    %c512 = arith.constant 512 : index
    %14 = vector.load %arg7[%c0_20, %c512] : memref<8x1024xbf16, #tpu.memory_space<vmem>>, vector<8x128xbf16>
    tpu.vector_store %arg7[%c0_20, %c512], %13 {strides = array<i32>} : memref<8x1024xbf16, #tpu.memory_space<vmem>>, vector<8x128xbf16>,
    %c0_21 = arith.constant 0 : index
    %c5 = arith.constant 5 : index
    %c0_22 = arith.constant 0 : index
    %c0_23 = arith.constant 0 : index
    %15 = vector.load %arg2[%c0_21, %c5, %c0_22, %c0_23] : memref<1x8x8x128xbf16, #tpu.memory_space<vmem>>, vector<1x1x8x128xbf16>
    %16 = vector.shape_cast %15 : vector<1x1x8x128xbf16> to vector<8x128xbf16>
    %c0_24 = arith.constant 0 : index
    %c640 = arith.constant 640 : index
    %17 = vector.load %arg7[%c0_24, %c640] : memref<8x1024xbf16, #tpu.memory_space<vmem>>, vector<8x128xbf16>
    tpu.vector_store %arg7[%c0_24, %c640], %16 {strides = array<i32>} : memref<8x1024xbf16, #tpu.memory_space<vmem>>, vector<8x128xbf16>,
    %c0_25 = arith.constant 0 : index
    %c6 = arith.constant 6 : index
    %c0_26 = arith.constant 0 : index
    %c0_27 = arith.constant 0 : index
    %18 = vector.load %arg2[%c0_25, %c6, %c0_26, %c0_27] : memref<1x8x8x128xbf16, #tpu.memory_space<vmem>>, vector<1x1x8x128xbf16>
    %19 = vector.shape_cast %18 : vector<1x1x8x128xbf16> to vector<8x128xbf16>
    %c0_28 = arith.constant 0 : index
    %c768 = arith.constant 768 : index
    %20 = vector.load %arg7[%c0_28, %c768] : memref<8x1024xbf16, #tpu.memory_space<vmem>>, vector<8x128xbf16>
    tpu.vector_store %arg7[%c0_28, %c768], %19 {strides = array<i32>} : memref<8x1024xbf16, #tpu.memory_space<vmem>>, vector<8x128xbf16>,
    %c0_29 = arith.constant 0 : index
    %c7 = arith.constant 7 : index
    %c0_30 = arith.constant 0 : index
    %c0_31 = arith.constant 0 : index
    %21 = vector.load %arg2[%c0_29, %c7, %c0_30, %c0_31] : memref<1x8x8x128xbf16, #tpu.memory_space<vmem>>, vector<1x1x8x128xbf16>
    %22 = vector.shape_cast %21 : vector<1x1x8x128xbf16> to vector<8x128xbf16>
    %c0_32 = arith.constant 0 : index
    %c896 = arith.constant 896 : index
    %23 = vector.load %arg7[%c0_32, %c896] : memref<8x1024xbf16, #tpu.memory_space<vmem>>, vector<8x128xbf16>
    tpu.vector_store %arg7[%c0_32, %c896], %22 {strides = array<i32>} : memref<8x1024xbf16, #tpu.memory_space<vmem>>, vector<8x128xbf16>,
    %c0_33 = arith.constant 0 : index
    %c0_34 = arith.constant 0 : index
    %24 = vector.load %arg3[%c0_33, %c0_34] : memref<32x8xbf16, #tpu.memory_space<vmem>>, vector<32x8xbf16>
    %c0_35 = arith.constant 0 : index
    %c0_36 = arith.constant 0 : index
    %25 = vector.load %arg7[%c0_35, %c0_36] : memref<8x1024xbf16, #tpu.memory_space<vmem>>, vector<8x1024xbf16>
    %cst = arith.constant dense<0.000000e+00> : vector<32x1024xf32>
    %26 = tpu.matmul %24, %25, %cst {dimension_numbers = #tpu.dot_dimension_numbers<[1], [0], [0], [1], [0, 0, 1, 1], [], []>} : vector<32x8xbf16>, vector<8x1024xbf16>, vector<32x1024xf32> -> vector<32x1024xf32>
    %cst_37 = arith.constant 0.000000e+00 : f32
    %27 = vector.broadcast %cst_37 : f32 to vector<32x1024xf32>
    %28 = arith.maximumf %26, %27 : vector<32x1024xf32>
    %c0_38 = arith.constant 0 : index
    %c0_39 = arith.constant 0 : index
    %29 = vector.load %arg4[%c0_38, %c0_39] : memref<64x32xbf16, #tpu.memory_space<vmem>>, vector<64x32xbf16>
    %c0_40 = arith.constant 0 : index
    %c0_41 = arith.constant 0 : index
    %30 = vector.load %arg5[%c0_40, %c0_41] : memref<64x1xf32, #tpu.memory_space<vmem>>, vector<64x1xf32>
    %31 = arith.truncf %28 : vector<32x1024xf32> to vector<32x1024xbf16>
    %cst_42 = arith.constant dense<0.000000e+00> : vector<64x1024xf32>
    %32 = tpu.matmul %29, %31, %cst_42 {dimension_numbers = #tpu.dot_dimension_numbers<[1], [0], [0], [1], [0, 0, 1, 1], [], []>} : vector<64x32xbf16>, vector<32x1024xbf16>, vector<64x1024xf32> -> vector<64x1024xf32>
    %33 = vector.broadcast %30 : vector<64x1xf32> to vector<64x1024xf32>
    %34 = arith.addf %32, %33 : vector<64x1024xf32>
    %cst_43 = arith.constant 0.000000e+00 : f32
    %35 = vector.broadcast %cst_43 : f32 to vector<64x1024xf32>
    %36 = arith.maximumf %34, %35 : vector<64x1024xf32>
    %37 = vector.extract_strided_slice %36 {offsets = [0, 0], sizes = [64, 128], strides = [1, 1]} : vector<64x1024xf32> to vector<64x128xf32>
    %38 = vector.extract_strided_slice %36 {offsets = [0, 128], sizes = [64, 128], strides = [1, 1]} : vector<64x1024xf32> to vector<64x128xf32>
    %39 = arith.maximumf %37, %38 : vector<64x128xf32>
    %40 = vector.extract_strided_slice %36 {offsets = [0, 256], sizes = [64, 128], strides = [1, 1]} : vector<64x1024xf32> to vector<64x128xf32>
    %41 = arith.maximumf %39, %40 : vector<64x128xf32>
    %42 = vector.extract_strided_slice %36 {offsets = [0, 384], sizes = [64, 128], strides = [1, 1]} : vector<64x1024xf32> to vector<64x128xf32>
    %43 = arith.maximumf %41, %42 : vector<64x128xf32>
    %44 = vector.extract_strided_slice %36 {offsets = [0, 512], sizes = [64, 128], strides = [1, 1]} : vector<64x1024xf32> to vector<64x128xf32>
    %45 = arith.maximumf %43, %44 : vector<64x128xf32>
    %46 = vector.extract_strided_slice %36 {offsets = [0, 640], sizes = [64, 128], strides = [1, 1]} : vector<64x1024xf32> to vector<64x128xf32>
    %47 = arith.maximumf %45, %46 : vector<64x128xf32>
    %48 = vector.extract_strided_slice %36 {offsets = [0, 768], sizes = [64, 128], strides = [1, 1]} : vector<64x1024xf32> to vector<64x128xf32>
    %49 = arith.maximumf %47, %48 : vector<64x128xf32>
    %50 = vector.extract_strided_slice %36 {offsets = [0, 896], sizes = [64, 128], strides = [1, 1]} : vector<64x1024xf32> to vector<64x128xf32>
    %51 = arith.maximumf %49, %50 : vector<64x128xf32>
    %c0_44 = arith.constant 0 : index
    %c0_45 = arith.constant 0 : index
    %c0_46 = arith.constant 0 : index
    %52 = vector.load %arg6[%c0_44, %c0_45, %c0_46] : memref<1x64x128xf32, #tpu.memory_space<vmem>>, vector<1x64x128xf32>
    %53 = vector.shape_cast %52 : vector<1x64x128xf32> to vector<64x128xf32>
    %54 = vector.shape_cast %51 : vector<64x128xf32> to vector<1x64x128xf32>
    tpu.vector_store %arg6[%c0_44, %c0_45, %c0_46], %54 {strides = array<i32>} : memref<1x64x128xf32, #tpu.memory_space<vmem>>, vector<1x64x128xf32>,
    return
  }
  func.func @transform_0(%arg0: i32, %arg1: i32) -> (i32, i32, i32, i32) {
    %c0_i32 = arith.constant 0 : i32
    %c0_i32_0 = arith.constant 0 : i32
    %c0_i32_1 = arith.constant 0 : i32
    return %arg0, %c0_i32, %c0_i32_0, %arg1 : i32, i32, i32, i32
  }
  func.func @transform_1(%arg0: i32, %arg1: i32) -> (i32, i32) {
    %c0_i32 = arith.constant 0 : i32
    %c0_i32_0 = arith.constant 0 : i32
    %c0_i32_1 = arith.constant 0 : i32
    return %c0_i32, %c0_i32_0 : i32, i32
  }
  func.func @transform_2(%arg0: i32, %arg1: i32) -> (i32, i32) {
    %c0_i32 = arith.constant 0 : i32
    %c0_i32_0 = arith.constant 0 : i32
    %c0_i32_1 = arith.constant 0 : i32
    return %c0_i32, %c0_i32_0 : i32, i32
  }
  func.func @transform_3(%arg0: i32, %arg1: i32) -> (i32, i32) {
    %c0_i32 = arith.constant 0 : i32
    %c0_i32_0 = arith.constant 0 : i32
    %c0_i32_1 = arith.constant 0 : i32
    return %c0_i32, %c0_i32_0 : i32, i32
  }
  func.func @transform_4(%arg0: i32, %arg1: i32) -> (i32, i32, i32) {
    %c0_i32 = arith.constant 0 : i32
    %c0_i32_0 = arith.constant 0 : i32
    return %arg0, %c0_i32, %arg1 : i32, i32, i32
  }
}

</mosaic_0001>

<llo_original>
// kernel: custom-call.10
$region0: #{custom-call.10}
  %s0 = inlined_call_operand.vmem [shape: s32[7,2], index: 0, kind: output, shape index: {}]

// kernel: custom-call.8
$region0: #{custom-call.8}
  %s0 = inlined_call_operand.vmem [shape: f32[2,16], index: 0, kind: output, shape index: {}]

// kernel: pointnet_sa_module_forward.1
$region0: #{pointnet_sa_module_forward.1}
  #allocation0 [shape = 'u32[]', space=smem, size = 0x4, offset = 0x4, fixed_abs, tag = 'smem constant byte address 0x4 - core index']
  #allocation1 [shape = 'u32[144,128]{1,0:T(1,128)}', space=vmem, size = 0x12000, scoped, tag = 'internal scratch']
  #allocation2 [shape = 'bf16[8,1024]{1,0:T(8,128)(2,1)}', space=vmem, size = 0x4000, scoped, tag = 'scratch operand']
  %s0 = inlined_call_operand.vmem [shape: bf16[2,8,8,128], index: 0, kind: input, shape index: {}]
  %s1 = inlined_call_operand.vmem [shape: bf16[32,8], index: 1, kind: input, shape index: {}]
  %s2 = inlined_call_operand.vmem [shape: bf16[64,32], index: 2, kind: input, shape index: {}]
  %s3 = inlined_call_operand.vmem [shape: f32[64,1], index: 3, kind: input, shape index: {}]
  %s4 = inlined_call_operand.vmem [shape: f32[2,64,128], index: 4, kind: output, shape index: {}]
  %s5 = sld [smem:[#allocation0]]
  $region49: #{pointnet_sa_module_forward.1} parent=0
    _
  %s7 = ssub.s32 1, %s5
  %s8 = scalar_select 0, %s7, %s5
  loop: start=0, step=1, limit=4
  $region2: #{pointnet_sa_module_forward.1} parent=0 // loop_pre_header
    _
  $region3: #{pointnet_sa_module_forward.1} parent=0 // loop_header
    %s10 = sphi 0, %s14
    %p11 = scmp.ge.s32.totalorder %s10, 4
    %s17 = sphi 0, %s29
    %s18 = sphi 0, %s25
    %s19 = sphi 0, %s17
    %s20 = sphi 0, %s18
    %s21 = sphi 0, %s19
    %s22 = sphi 0, %s20
    %s34 = sphi 0, %s36
    %s37 = sphi 0, %s34
    %s38 = sphi 0, %s37
    %s54 = sphi 0, %s38
    %s58 = sphi 0, %s58
    %s60 = sphi 0, %s58
    %s61 = sphi 0, %s60
    %s75 = sphi 0, %s61
    %s79 = sphi 0, %s79
    %s81 = sphi 0, %s79
    %s82 = sphi 0, %s81
    %s96 = sphi 0, %s82
    %s100 = sphi 0, %s100
    %s102 = sphi 0, %s100
    %s103 = sphi 0, %s102
    %s117 = sphi 0, %s103
    %s125 = sphi 0, %s127
    %s128 = sphi 0, %s125
    %s129 = sphi 0, %s128
    %s145 = sphi 0, %s129
  $region4: #{pointnet_sa_module_forward.1} parent=0 // loop_header_branch
    %13 = sbr.rel (%p11) target = $region8
  $region5: #{pointnet_sa_module_forward.1} parent=0 // loop_body
    %s15 = ssub.s32 %s10, 1
    %s16 = ssub.s32 %s10, 2
    %s23 = sadd.s32 1, %s18
    %p24 = scmp.ge.s32.totalorder %s23, 1
    %s25 = scalar_select %p24, 0, %s23
    %s26 = sadd.s32 1, %s17
    %s27 = scalar_select %p24, %s26, %s17
    %p28 = scmp.ge.s32.totalorder %s27, 2
    %s29 = scalar_select %p28, 0, %s27
    %s30 = ssub.s32 %s17, %s29
    %s31 = ssub.s32 %s18, %s25
    %s32 = sor.u32 %s30, %s31
    %p33 = scmp.eq.s32.totalorder %s32, 0
    %s35 = sadd.s32 %s34, 1
    %s36 = scalar_select %p33, %s34, %s35
    %p39 = pneg %p33
    %p40 = scmp.eq.s32.totalorder %s10, 1
    %p41 = por %p39, %p40
    %p42 = scmp.ne.s32.totalorder %s34, %s37
    %p43 = scmp.eq.s32.totalorder %s10, 0
    %p44 = por %p42, %p43
    %p45 = scmp.ne.s32.totalorder %s34, %s37
    %p46 = scmp.eq.s32.totalorder %s15, 1
    %p47 = por %p45, %p46
    %p48 = scmp.ne.s32.totalorder %s37, %s38
    %p49 = scmp.eq.s32.totalorder %s15, 0
    %p50 = por %p48, %p49
    %p51 = scmp.ne.s32.totalorder %s37, %s38
    %p52 = scmp.eq.s32.totalorder %s16, 1
    %p53 = por %p51, %p52
    %p55 = scmp.ne.s32.totalorder %s38, %s54
    %p56 = scmp.eq.s32.totalorder %s16, 0
    %p57 = por %p55, %p56
    %s59 = sadd.s32 %s58, 1
    %p62 = scmp.eq.s32.totalorder %s10, 1
    %p63 = scmp.ne.s32.totalorder %s58, %s60
    %p64 = scmp.eq.s32.totalorder %s10, 0
    %p65 = por %p63, %p64
    %p66 = scmp.ne.s32.totalorder %s58, %s60
    %p67 = scmp.eq.s32.totalorder %s15, 1
    %p68 = por %p66, %p67
    %p69 = scmp.ne.s32.totalorder %s60, %s61
    %p70 = scmp.eq.s32.totalorder %s15, 0
    %p71 = por %p69, %p70
    %p72 = scmp.ne.s32.totalorder %s60, %s61
    %p73 = scmp.eq.s32.totalorder %s16, 1
    %p74 = por %p72, %p73
    %p76 = scmp.ne.s32.totalorder %s61, %s75
    %p77 = scmp.eq.s32.totalorder %s16, 0
    %p78 = por %p76, %p77
    %s80 = sadd.s32 %s79, 1
    %p83 = scmp.eq.s32.totalorder %s10, 1
    %p84 = scmp.ne.s32.totalorder %s79, %s81
    %p85 = scmp.eq.s32.totalorder %s10, 0
    %p86 = por %p84, %p85
    %p87 = scmp.ne.s32.totalorder %s79, %s81
    %p88 = scmp.eq.s32.totalorder %s15, 1
    %p89 = por %p87, %p88
    %p90 = scmp.ne.s32.totalorder %s81, %s82
    %p91 = scmp.eq.s32.totalorder %s15, 0
    %p92 = por %p90, %p91
    %p93 = scmp.ne.s32.totalorder %s81, %s82
    %p94 = scmp.eq.s32.totalorder %s16, 1
    %p95 = por %p93, %p94
    %p97 = scmp.ne.s32.totalorder %s82, %s96
    %p98 = scmp.eq.s32.totalorder %s16, 0
    %p99 = por %p97, %p98
    %s101 = sadd.s32 %s100, 1
    %p104 = scmp.eq.s32.totalorder %s10, 1
    %p105 = scmp.ne.s32.totalorder %s100, %s102
    %p106 = scmp.eq.s32.totalorder %s10, 0
    %p107 = por %p105, %p106
    %p108 = scmp.ne.s32.totalorder %s100, %s102
    %p109 = scmp.eq.s32.totalorder %s15, 1
    %p110 = por %p108, %p109
    %p111 = scmp.ne.s32.totalorder %s102, %s103
    %p112 = scmp.eq.s32.totalorder %s15, 0
    %p113 = por %p111, %p112
    %p114 = scmp.ne.s32.totalorder %s102, %s103
    %p115 = scmp.eq.s32.totalorder %s16, 1
    %p116 = por %p114, %p115
    %p118 = scmp.ne.s32.totalorder %s103, %s117
    %p119 = scmp.eq.s32.totalorder %s16, 0
    %p120 = por %p118, %p119
    %s121 = ssub.s32 %s17, %s29
    %s122 = ssub.s32 %s18, %s25
    %s123 = sor.u32 %s121, %s122
    %p124 = scmp.eq.s32.totalorder %s123, 0
    %s126 = sadd.s32 %s125, 1
    %s127 = scalar_select %p124, %s125, %s126
    %p130 = pneg %p124
    %p131 = scmp.eq.s32.totalorder %s10, 1
    %p132 = por %p130, %p131
    %p133 = scmp.ne.s32.totalorder %s125, %s128
    %p134 = scmp.eq.s32.totalorder %s10, 0
    %p135 = por %p133, %p134
    %p136 = scmp.ne.s32.totalorder %s125, %s128
    %p137 = scmp.eq.s32.totalorder %s15, 1
    %p138 = por %p136, %p137
    %p139 = scmp.ne.s32.totalorder %s128, %s129
    %p140 = scmp.eq.s32.totalorder %s15, 0
    %p141 = por %p139, %p140
    %p142 = scmp.ne.s32.totalorder %s128, %s129
    %p143 = scmp.eq.s32.totalorder %s16, 1
    %p144 = por %p142, %p143
    %p146 = scmp.ne.s32.totalorder %s129, %s145
    %p147 = scmp.eq.s32.totalorder %s16, 0
    %p148 = por %p146, %p147
    %p149 = scmp.le.s32.totalorder 1, %s10
    %p150 = scmp.lt.s32.totalorder %s10, 3
    %p151 = pnand %p149, %p150
    %p152 = pneg %p151
    // Predicated region
    $region9: #{pointnet_sa_module_forward.1} parent=5 // pred_check
      _
    $region10: #{pointnet_sa_module_forward.1} parent=5 // pred_check_branch
      %154 = sbr.rel (%p151) target = $region12
    $region11: #{pointnet_sa_module_forward.1} parent=5 // pred_region
      %s155 = ssub.s32 %s10, 1
      // Predicated region
      $region13: #{pointnet_sa_module_forward.1} parent=11 // pred_check
        %p156 = pneg %p71
      $region14: #{pointnet_sa_module_forward.1} parent=11 // pred_check_branch
        %158 = sbr.rel (%p156) target = $region16
      $region15: #{pointnet_sa_module_forward.1} parent=11 // pred_region
        _
      $region16: #{pointnet_sa_module_forward.1} parent=11 // pred_fallthru
        _
      // Predicated region
      $region17: #{pointnet_sa_module_forward.1} parent=11 // pred_check
        %p159 = pneg %p92
      $region18: #{pointnet_sa_module_forward.1} parent=11 // pred_check_branch
        %161 = sbr.rel (%p159) target = $region20
      $region19: #{pointnet_sa_module_forward.1} parent=11 // pred_region
        _
      $region20: #{pointnet_sa_module_forward.1} parent=11 // pred_fallthru
        _
      // Predicated region
      $region21: #{pointnet_sa_module_forward.1} parent=11 // pred_check
        %p162 = pneg %p113
      $region22: #{pointnet_sa_module_forward.1} parent=11 // pred_check_branch
        %164 = sbr.rel (%p162) target = $region24
      $region23: #{pointnet_sa_module_forward.1} parent=11 // pred_region
        _
      $region24: #{pointnet_sa_module_forward.1} parent=11 // pred_fallthru
        _
    $region12: #{pointnet_sa_module_forward.1} parent=5 // pred_fallthru
      _
    %p165 = scmp.lt.s32.totalorder %s10, 2
    // Predicated region
    $region25: #{pointnet_sa_module_forward.1} parent=5 // pred_check
      %p166 = pneg %p165
    $region26: #{pointnet_sa_module_forward.1} parent=5 // pred_check_branch
      %168 = sbr.rel (%p166) target = $region28
    $region27: #{pointnet_sa_module_forward.1} parent=5 // pred_region
      // Predicated region
      $region29: #{pointnet_sa_module_forward.1} parent=27 // pred_check
        %p169 = pneg %p44
      $region30: #{pointnet_sa_module_forward.1} parent=27 // pred_check_branch
        %171 = sbr.rel (%p169) target = $region32
      $region31: #{pointnet_sa_module_forward.1} parent=27 // pred_region
        %p172 = scmp.lt.s32.totalorder %s17, 1
        %s173 = scalar_select %p172, %s17, 1
        %p174 = scmp.lt.s32.totalorder %s18, 0
        %s175 = scalar_select %p174, %s18, 0
        %s176 = smul.addr %s173, 8
        %s177 = sadd.s32 %s175, %s176
        %s178 = smul.addr %s177, 4
        %s179 = scalar_lea.vmem %s0, %s178
      $region32: #{pointnet_sa_module_forward.1} parent=27 // pred_fallthru
        _
    $region28: #{pointnet_sa_module_forward.1} parent=5 // pred_fallthru
      _
    %p180 = scmp.le.s32.totalorder 1, %s10
    %p181 = scmp.lt.s32.totalorder %s10, 3
    %p182 = pnand %p180, %p181
    %p183 = pneg %p182
    // Predicated region
    $region33: #{pointnet_sa_module_forward.1} parent=5 // pred_check
      _
    $region34: #{pointnet_sa_module_forward.1} parent=5 // pred_check_branch
      %185 = sbr.rel (%p182) target = $region36
    $region35: #{pointnet_sa_module_forward.1} parent=5 // pred_region
      %s186 = ssub.s32 %s10, 1
      %p187 = scmp.lt.s32.totalorder %s19, 1
      %s188 = scalar_select %p187, %s19, 1
      %p189 = scmp.lt.s32.totalorder %s20, 0
      %s190 = scalar_select %p189, %s20, 0
      %s191 = smul.addr %s188, 8
      %s192 = sadd.s32 %s190, %s191
      %s193 = smul.addr %s192, 4
      %s194 = scalar_lea.vmem %s0, %s193
      %p195 = pneg %p50
      %p196 = pneg %p47
      %p197 = pneg %p71
      %p198 = pneg %p68
      %p199 = pneg %p92
      %p200 = pneg %p89
      %p201 = pneg %p113
      %p202 = pneg %p110
      %p203 = pneg %p141
      %p204 = pneg %p138
      %p205 = scmp.lt.s32.totalorder %s19, 1
      %s206 = scalar_select %p205, %s19, 1
      %p207 = scmp.lt.s32.totalorder %s20, 0
      %s208 = scalar_select %p207, %s20, 0
      %s209 = smul.addr %s206, 8
      %s210 = sadd.s32 %s208, %s209
      %s211 = smul.addr %s210, 8
      %s212 = scalar_lea.vmem %s4, %s211
      %p213 = scmp.lt.s32.totalorder %s19, 1
      %s214 = scalar_select %p213, %s19, 1
      %p215 = scmp.lt.s32.totalorder %s20, 0
      %s216 = scalar_select %p215, %s20, 0
      %s217 = smul.addr %s214, 8
      %s218 = sadd.s32 %s216, %s217
      %s219 = smul.addr %s218, 4
      %s220 = scalar_lea.vmem %s0, %s219
      %p221 = scmp.lt.s32.totalorder %s19, 1
      %s222 = scalar_select %p221, %s19, 1
      %p223 = scmp.lt.s32.totalorder %s20, 0
      %s224 = scalar_select %p223, %s20, 0
      %s225 = smul.addr %s222, 8
      %s226 = sadd.s32 %s224, %s225
      %s227 = smul.addr %s226, 8
      %s228 = scalar_lea.vmem %s4, %s227
      %v230 = vld [vmem:[%s220] sm:$0xf]
      %231 = vst [vmem:[#allocation2] sm:$0xf] %v230
      %s232 = scalar_lea.vmem %s220, 4
      %v233 = vld [vmem:[%s232] sm:$0xf]
      %234 = vst [vmem:[#allocation2 + $0x4] sm:$0xf] %v233
      %s235 = scalar_lea.vmem %s220, 8
      %v236 = vld [vmem:[%s235] sm:$0xf]
      %237 = vst [vmem:[#allocation2 + $0x8] sm:$0xf] %v236
      %s238 = scalar_lea.vmem %s220, 12
      %v239 = vld [vmem:[%s238] sm:$0xf]
      %240 = vst [vmem:[#allocation2 + $0xc] sm:$0xf] %v239
      %s241 = scalar_lea.vmem %s220, 16
      %v242 = vld [vmem:[%s241] sm:$0xf]
      %243 = vst [vmem:[#allocation2 + $0x10] sm:$0xf] %v242
      %s244 = scalar_lea.vmem %s220, 20
      %v245 = vld [vmem:[%s244] sm:$0xf]
      %246 = vst [vmem:[#allocation2 + $0x14] sm:$0xf] %v245
      %s247 = scalar_lea.vmem %s220, 24
      %v248 = vld [vmem:[%s247] sm:$0xf]
      %249 = vst [vmem:[#allocation2 + $0x18] sm:$0xf] %v248
      %s250 = scalar_lea.vmem %s220, 28
      %v251 = vld [vmem:[%s250] sm:$0xf]
      %252 = vst [vmem:[#allocation2 + $0x1c] sm:$0xf] %v251
      %v253 = vld [vmem:[%s1] sm:$0xf]
      %v254 = vld [vmem:[%s1 + $0x4] sm:$0xf]
      %v255 = vld [vmem:[%s1 + $0x8] sm:$0xf]
      %v256 = vld [vmem:[%s1 + $0xc] sm:$0xf]
      %v257 = vld [vmem:[#allocation2] sm:$0xff]
      %v258 = vld [vmem:[#allocation2 + $0x8] sm:$0xff]
      %v259 = vld [vmem:[#allocation2 + $0x10] sm:$0xff]
      %v260 = vld [vmem:[#allocation2 + $0x18] sm:$0xff]
      %v265 = vunpack.c.l.b16 %v253
      %v266 = vunpack.c.l.b16 %v254
      %v267 = vunpack.c.l.b16 %v255
      %v268 = vunpack.c.l.b16 %v256
      %v269 = vpack.c.b16 %v266, %v265
      %v270 = vpack.c.b16 %v268, %v267
      %v275 = vunpack.c.l.b16 %v257
      %v276 = vunpack.c.h.b16 %v257
      %v277 = vunpack.c.l.b16 %v258
      %v278 = vunpack.c.h.b16 %v258
      %v279 = vunpack.c.l.b16 %v259
      %v280 = vunpack.c.h.b16 %v259
      %v281 = vunpack.c.l.b16 %v260
      %v282 = vunpack.c.h.b16 %v260
      %v283 = vpack.c.b16 %v275, %v275
      %v284 = vpack.c.b16 %v276, %v276
      %v285 = vpack.c.b16 %v277, %v277
      %v286 = vpack.c.b16 %v278, %v278
      %v287 = vpack.c.b16 %v279, %v279
      %v288 = vpack.c.b16 %v280, %v280
      %v289 = vpack.c.b16 %v281, %v281
      %v290 = vpack.c.b16 %v282, %v282
      %vm291 = vcmask 64512
      %v293 = vsel %vm291, %v269, 0
      %v296 = vsel %vm291, %v270, 0
      %vm298 = vcmask 1043456
      %v300 = vsel %vm298, %v283, 0
      %v303 = vsel %vm298, %v284, 0
      %v306 = vsel %vm298, %v285, 0
      %v309 = vsel %vm298, %v286, 0
      %v312 = vsel %vm298, %v287, 0
      %v315 = vsel %vm298, %v288, 0
      %v318 = vsel %vm298, %v289, 0
      %v321 = vsel %vm298, %v290, 0
      %323 = vmatprep.subr.bf16.mxu0 %v303
      %324 = vmatpush1.bf16.msra.mxu0 %v300
      %325 = vmatprep.subr.bf16.mxu0 0
      %326 = vmatpush1.bf16.msra.mxu0 0
      %327 = vmatprep.subr.bf16.mxu0 0
      %328 = vmatpush1.bf16.msra.mxu0 0
      %329 = vmatprep.subr.bf16.mxu0 0
      %330 = vmatpush1.bf16.msra.mxu0 0
      %331 = vmatprep.subr.bf16.mxu0 0
      %332 = vmatpush1.bf16.msra.mxu0 0
      %333 = vmatprep.subr.bf16.mxu0 0
      %334 = vmatpush1.bf16.msra.mxu0 0
      %335 = vmatprep.subr.bf16.mxu0 0
      %336 = vmatpush1.bf16.msra.mxu0 0
      %337 = vmatprep.subr.bf16.mxu0 0
      %338 = vmatpush1.bf16.msra.mxu0 0
      %339 = vmatprep.subr.bf16.mxu0 0
      %340 = vmatpush1.bf16.msra.mxu0 0
      %341 = vmatprep.subr.bf16.mxu0 0
      %342 = vmatpush1.bf16.msra.mxu0 0
      %343 = vmatprep.subr.bf16.mxu0 0
      %344 = vmatpush1.bf16.msra.mxu0 0
      %345 = vmatprep.subr.bf16.mxu0 0
      %346 = vmatpush1.bf16.msra.mxu0 0
      %347 = vmatprep.subr.bf16.mxu0 0
      %348 = vmatpush1.bf16.msra.mxu0 0
      %349 = vmatprep.subr.bf16.mxu0 0
      %350 = vmatpush1.bf16.msra.mxu0 0
      %351 = vmatprep.subr.bf16.mxu0 0
      %352 = vmatpush1.bf16.msra.mxu0 0
      %353 = vmatprep.subr.bf16.mxu0 0
      %354 = vmatpush1.bf16.msra.mxu0 0
      %355 = vmatprep.mubr.bf16.mxu0 0
      %356 = vmatmul.mubr.bf16.gmra.mrb[0].mxu0 %v293
      %v357 = vpop.f32.mrb[0].mxu0
      %v358 = vadd.f32 0.0, %v357
      %v359 = vpop.f32.mrb[0].mxu0
      %v360 = vadd.f32 0.0, %v359
      %v361 = vpop.f32.mrb[0].mxu0
      %v362 = vadd.f32 0.0, %v361
      %v363 = vpop.f32.mrb[0].mxu0
      %v364 = vadd.f32 0.0, %v363
      %365 = vmatprep.mubr.bf16.mxu0 0
      %366 = vmatmul.mubr.bf16.gmra.mrb[0].mxu0 %v296
      %v367 = vpop.f32.mrb[0].mxu0
      %v368 = vadd.f32 0.0, %v367
      %v369 = vpop.f32.mrb[0].mxu0
      %v370 = vadd.f32 0.0, %v369
      %v371 = vpop.f32.mrb[0].mxu0
      %v372 = vadd.f32 0.0, %v371
      %v373 = vpop.f32.mrb[0].mxu0
      %v374 = vadd.f32 0.0, %v373
      %375 = vdwg.mxu0
      %376 = vmatprep.subr.bf16.mxu0 %v309
      %377 = vmatpush1.bf16.msra.mxu0 %v306
      %378 = vmatprep.subr.bf16.mxu0 0
      %379 = vmatpush1.bf16.msra.mxu0 0
      %380 = vmatprep.subr.bf16.mxu0 0
      %381 = vmatpush1.bf16.msra.mxu0 0
      %382 = vmatprep.subr.bf16.mxu0 0
      %383 = vmatpush1.bf16.msra.mxu0 0
      %384 = vmatprep.subr.bf16.mxu0 0
      %385 = vmatpush1.bf16.msra.mxu0 0
      %386 = vmatprep.subr.bf16.mxu0 0
      %387 = vmatpush1.bf16.msra.mxu0 0
      %388 = vmatprep.subr.bf16.mxu0 0
      %389 = vmatpush1.bf16.msra.mxu0 0
      %390 = vmatprep.subr.bf16.mxu0 0
      %391 = vmatpush1.bf16.msra.mxu0 0
      %392 = vmatprep.subr.bf16.mxu0 0
      %393 = vmatpush1.bf16.msra.mxu0 0
      %394 = vmatprep.subr.bf16.mxu0 0
      %395 = vmatpush1.bf16.msra.mxu0 0
      %396 = vmatprep.subr.bf16.mxu0 0
      %397 = vmatpush1.bf16.msra.mxu0 0
      %398 = vmatprep.subr.bf16.mxu0 0
      %399 = vmatpush1.bf16.msra.mxu0 0
      %400 = vmatprep.subr.bf16.mxu0 0
      %401 = vmatpush1.bf16.msra.mxu0 0
      %402 = vmatprep.subr.bf16.mxu0 0
      %403 = vmatpush1.bf16.msra.mxu0 0
      %404 = vmatprep.subr.bf16.mxu0 0
      %405 = vmatpush1.bf16.msra.mxu0 0
      %406 = vmatprep.subr.bf16.mxu0 0
      %407 = vmatpush1.bf16.msra.mxu0 0
      %408 = vmatprep.mubr.bf16.mxu0 0
      %409 = vmatmul.mubr.bf16.gmra.mrb[0].mxu0 %v293
      %v410 = vpop.f32.mrb[0].mxu0
      %v411 = vadd.f32 0.0, %v410
      %v412 = vpop.f32.mrb[0].mxu0
      %v413 = vadd.f32 0.0, %v412
      %v414 = vpop.f32.mrb[0].mxu0
      %v415 = vadd.f32 0.0, %v414
      %v416 = vpop.f32.mrb[0].mxu0
      %v417 = vadd.f32 0.0, %v416
      %418 = vmatprep.mubr.bf16.mxu0 0
      %419 = vmatmul.mubr.bf16.gmra.mrb[0].mxu0 %v296
      %v420 = vpop.f32.mrb[0].mxu0
      %v421 = vadd.f32 0.0, %v420
      %v422 = vpop.f32.mrb[0].mxu0
      %v423 = vadd.f32 0.0, %v422
      %v424 = vpop.f32.mrb[0].mxu0
      %v425 = vadd.f32 0.0, %v424
      %v426 = vpop.f32.mrb[0].mxu0
      %v427 = vadd.f32 0.0, %v426
      %428 = vdwg.mxu0
      %429 = vmatprep.subr.bf16.mxu0 %v315
      %430 = vmatpush1.bf16.msra.mxu0 %v312
      %431 = vmatprep.subr.bf16.mxu0 0
      %432 = vmatpush1.bf16.msra.mxu0 0
      %433 = vmatprep.subr.bf16.mxu0 0
      %434 = vmatpush1.bf16.msra.mxu0 0
      %435 = vmatprep.subr.bf16.mxu0 0
      %436 = vmatpush1.bf16.msra.mxu0 0
      %437 = vmatprep.subr.bf16.mxu0 0
      %438 = vmatpush1.bf16.msra.mxu0 0
      %439 = vmatprep.subr.bf16.mxu0 0
      %440 = vmatpush1.bf16.msra.mxu0 0
      %441 = vmatprep.subr.bf16.mxu0 0
      %442 = vmatpush1.bf16.msra.mxu0 0
      %443 = vmatprep.subr.bf16.mxu0 0
      %444 = vmatpush1.bf16.msra.mxu0 0
      %445 = vmatprep.subr.bf16.mxu0 0
      %446 = vmatpush1.bf16.msra.mxu0 0
      %447 = vmatprep.subr.bf16.mxu0 0
      %448 = vmatpush1.bf16.msra.mxu0 0
      %449 = vmatprep.subr.bf16.mxu0 0
      %450 = vmatpush1.bf16.msra.mxu0 0
      %451 = vmatprep.subr.bf16.mxu0 0
      %452 = vmatpush1.bf16.msra.mxu0 0
      %453 = vmatprep.subr.bf16.mxu0 0
      %454 = vmatpush1.bf16.msra.mxu0 0
      %455 = vmatprep.subr.bf16.mxu0 0
      %456 = vmatpush1.bf16.msra.mxu0 0
      %457 = vmatprep.subr.bf16.mxu0 0
      %458 = vmatpush1.bf16.msra.mxu0 0
      %459 = vmatprep.subr.bf16.mxu0 0
      %460 = vmatpush1.bf16.msra.mxu0 0
      %461 = vmatprep.mubr.bf16.mxu0 0
      %462 = vmatmul.mubr.bf16.gmra.mrb[0].mxu0 %v293
      %v463 = vpop.f32.mrb[0].mxu0
      %v464 = vadd.f32 0.0, %v463
      %v465 = vpop.f32.mrb[0].mxu0
      %v466 = vadd.f32 0.0, %v465
      %v467 = vpop.f32.mrb[0].mxu0
      %v468 = vadd.f32 0.0, %v467
      %v469 = vpop.f32.mrb[0].mxu0
      %v470 = vadd.f32 0.0, %v469
      %471 = vmatprep.mubr.bf16.mxu0 0
      %472 = vmatmul.mubr.bf16.gmra.mrb[0].mxu0 %v296
      %v473 = vpop.f32.mrb[0].mxu0
      %v474 = vadd.f32 0.0, %v473
      %v475 = vpop.f32.mrb[0].mxu0
      %v476 = vadd.f32 0.0, %v475
      %v477 = vpop.f32.mrb[0].mxu0
      %v478 = vadd.f32 0.0, %v477
      %v479 = vpop.f32.mrb[0].mxu0
      %v480 = vadd.f32 0.0, %v479
      %481 = vdwg.mxu0
      %482 = vmatprep.subr.bf16.mxu0 %v321
      %483 = vmatpush1.bf16.msra.mxu0 %v318
      %484 = vmatprep.subr.bf16.mxu0 0
      %485 = vmatpush1.bf16.msra.mxu0 0
      %486 = vmatprep.subr.bf16.mxu0 0
      %487 = vmatpush1.bf16.msra.mxu0 0
      %488 = vmatprep.subr.bf16.mxu0 0
      %489 = vmatpush1.bf16.msra.mxu0 0
      %490 = vmatprep.subr.bf16.mxu0 0
      %491 = vmatpush1.bf16.msra.mxu0 0
      %492 = vmatprep.subr.bf16.mxu0 0
      %493 = vmatpush1.bf16.msra.mxu0 0
      %494 = vmatprep.subr.bf16.mxu0 0
      %495 = vmatpush1.bf16.msra.mxu0 0
      %496 = vmatprep.subr.bf16.mxu0 0
      %497 = vmatpush1.bf16.msra.mxu0 0
      %498 = vmatprep.subr.bf16.mxu0 0
      %499 = vmatpush1.bf16.msra.mxu0 0
      %500 = vmatprep.subr.bf16.mxu0 0
      %501 = vmatpush1.bf16.msra.mxu0 0
      %502 = vmatprep.subr.bf16.mxu0 0
      %503 = vmatpush1.bf16.msra.mxu0 0
      %504 = vmatprep.subr.bf16.mxu0 0
      %505 = vmatpush1.bf16.msra.mxu0 0
      %506 = vmatprep.subr.bf16.mxu0 0
      %507 = vmatpush1.bf16.msra.mxu0 0
      %508 = vmatprep.subr.bf16.mxu0 0
      %509 = vmatpush1.bf16.msra.mxu0 0
      %510 = vmatprep.subr.bf16.mxu0 0
      %511 = vmatpush1.bf16.msra.mxu0 0
      %512 = vmatprep.subr.bf16.mxu0 0
      %513 = vmatpush1.bf16.msra.mxu0 0
      %514 = vmatprep.mubr.bf16.mxu0 0
      %515 = vmatmul.mubr.bf16.gmra.mrb[0].mxu0 %v293
      %v516 = vpop.f32.mrb[0].mxu0
      %v517 = vadd.f32 0.0, %v516
      %v518 = vpop.f32.mrb[0].mxu0
      %v519 = vadd.f32 0.0, %v518
      %v520 = vpop.f32.mrb[0].mxu0
      %v521 = vadd.f32 0.0, %v520
      %v522 = vpop.f32.mrb[0].mxu0
      %v523 = vadd.f32 0.0, %v522
      %524 = vmatprep.mubr.bf16.mxu0 0
      %525 = vmatmul.mubr.bf16.gmra.mrb[0].mxu0 %v296
      %v526 = vpop.f32.mrb[0].mxu0
      %v527 = vadd.f32 0.0, %v526
      %v528 = vpop.f32.mrb[0].mxu0
      %v529 = vadd.f32 0.0, %v528
      %v530 = vpop.f32.mrb[0].mxu0
      %v531 = vadd.f32 0.0, %v530
      %v532 = vpop.f32.mrb[0].mxu0
      %v533 = vadd.f32 0.0, %v532
      %534 = vdwg.mxu0
      %v535 = vmax.f32 %v358, 0.0
      %v536 = vmax.f32 %v360, 0.0
      %v537 = vmax.f32 %v411, 0.0
      %v538 = vmax.f32 %v413, 0.0
      %v539 = vmax.f32 %v464, 0.0
      %v540 = vmax.f32 %v466, 0.0
      %v541 = vmax.f32 %v517, 0.0
      %v542 = vmax.f32 %v519, 0.0
      %v543 = vmax.f32 %v362, 0.0
      %v544 = vmax.f32 %v364, 0.0
      %v545 = vmax.f32 %v415, 0.0
      %v546 = vmax.f32 %v417, 0.0
      %v547 = vmax.f32 %v468, 0.0
      %v548 = vmax.f32 %v470, 0.0
      %v549 = vmax.f32 %v521, 0.0
      %v550 = vmax.f32 %v523, 0.0
      %v551 = vmax.f32 %v368, 0.0
      %v552 = vmax.f32 %v370, 0.0
      %v553 = vmax.f32 %v421, 0.0
      %v554 = vmax.f32 %v423, 0.0
      %v555 = vmax.f32 %v474, 0.0
      %v556 = vmax.f32 %v476, 0.0
      %v557 = vmax.f32 %v527, 0.0
      %v558 = vmax.f32 %v529, 0.0
      %v559 = vmax.f32 %v372, 0.0
      %v560 = vmax.f32 %v374, 0.0
      %v561 = vmax.f32 %v425, 0.0
      %v562 = vmax.f32 %v427, 0.0
      %v563 = vmax.f32 %v478, 0.0
      %v564 = vmax.f32 %v480, 0.0
      %v565 = vmax.f32 %v531, 0.0
      %v566 = vmax.f32 %v533, 0.0
      %v567 = vld [vmem:[%s2] sm:$0xf]
      %v568 = vld [vmem:[%s2 + $0x4] sm:$0xf]
      %v569 = vld [vmem:[%s2 + $0x8] sm:$0xf]
      %v570 = vld [vmem:[%s2 + $0xc] sm:$0xf]
      %v571 = vld [vmem:[%s2 + $0x10] sm:$0xf]
      %v572 = vld [vmem:[%s2 + $0x14] sm:$0xf]
      %v573 = vld [vmem:[%s2 + $0x18] sm:$0xf]
      %v574 = vld [vmem:[%s2 + $0x1c] sm:$0xf]
      %v575 = vld [vmem:[%s3] sm:$0xff]
      %v576 = vld [vmem:[%s3 + $0x8] sm:$0xff]
      %v577 = vld [vmem:[%s3 + $0x10] sm:$0xff]
      %v578 = vld [vmem:[%s3 + $0x18] sm:$0xff]
      %v579 = vld [vmem:[%s3 + $0x20] sm:$0xff]
      %v580 = vld [vmem:[%s3 + $0x28] sm:$0xff]
      %v581 = vld [vmem:[%s3 + $0x30] sm:$0xff]
      %v582 = vld [vmem:[%s3 + $0x38] sm:$0xff]
      %v583 = vpack.c.bf16 %v543, %v535
      %v584 = vpack.c.bf16 %v544, %v536
      %v585 = vpack.c.bf16 %v545, %v537
      %v586 = vpack.c.bf16 %v546, %v538
      %v587 = vpack.c.bf16 %v547, %v539
      %v588 = vpack.c.bf16 %v548, %v540
      %v589 = vpack.c.bf16 %v549, %v541
      %v590 = vpack.c.bf16 %v550, %v542
      %v591 = vpack.c.bf16 %v559, %v551
      %v592 = vpack.c.bf16 %v560, %v552
      %v593 = vpack.c.bf16 %v561, %v553
      %v594 = vpack.c.bf16 %v562, %v554
      %v595 = vpack.c.bf16 %v563, %v555
      %v596 = vpack.c.bf16 %v564, %v556
      %v597 = vpack.c.bf16 %v565, %v557
      %v598 = vpack.c.bf16 %v566, %v558
      %600 = vset.pattern.permute.xlu0 0
      %601 = vperm.xlu0 %600, %v575
      %v602 = vpop.permute.xlu0 %601
      %605 = vset.pattern.permute.xlu0 0
      %606 = vperm.xlu0 %605, %v576
      %v607 = vpop.permute.xlu0 %606
      %610 = vset.pattern.permute.xlu0 0
      %611 = vperm.xlu0 %610, %v577
      %v612 = vpop.permute.xlu0 %611
      %615 = vset.pattern.permute.xlu0 0
      %616 = vperm.xlu0 %615, %v578
      %v617 = vpop.permute.xlu0 %616
      %620 = vset.pattern.permute.xlu0 0
      %621 = vperm.xlu0 %620, %v579
      %v622 = vpop.permute.xlu0 %621
      %625 = vset.pattern.permute.xlu0 0
      %626 = vperm.xlu0 %625, %v580
      %v627 = vpop.permute.xlu0 %626
      %630 = vset.pattern.permute.xlu0 0
      %631 = vperm.xlu0 %630, %v581
      %v632 = vpop.permute.xlu0 %631
      %635 = vset.pattern.permute.xlu0 0
      %636 = vperm.xlu0 %635, %v582
      %v637 = vpop.permute.xlu0 %636
      %v647 = vunpack.c.l.b16 %v567
      %v648 = vunpack.c.l.b16 %v568
      %v649 = vunpack.c.l.b16 %v569
      %v650 = vunpack.c.l.b16 %v570
      %v651 = vunpack.c.l.b16 %v571
      %v652 = vunpack.c.l.b16 %v572
      %v653 = vunpack.c.l.b16 %v573
      %v654 = vunpack.c.l.b16 %v574
      %v655 = vpack.c.b16 %v648, %v647
      %v656 = vpack.c.b16 %v650, %v649
      %v657 = vpack.c.b16 %v652, %v651
      %v658 = vpack.c.b16 %v654, %v653
      %vm659 = vcmask 261120
      %v661 = vsel %vm659, %v655, 0
      %v664 = vsel %vm659, %v656, 0
      %v667 = vsel %vm659, %v657, 0
      %v670 = vsel %vm659, %v658, 0
      %672 = vmatprep.subr.bf16.mxu0 %v584
      %673 = vmatpush1.bf16.msra.mxu0 %v583
      %674 = vmatprep.subr.bf16.mxu0 %v592
      %675 = vmatpush1.bf16.msra.mxu0 %v591
      %676 = vmatprep.subr.bf16.mxu0 0
      %677 = vmatpush1.bf16.msra.mxu0 0
      %678 = vmatprep.subr.bf16.mxu0 0
      %679 = vmatpush1.bf16.msra.mxu0 0
      %680 = vmatprep.subr.bf16.mxu0 0
      %681 = vmatpush1.bf16.msra.mxu0 0
      %682 = vmatprep.subr.bf16.mxu0 0
      %683 = vmatpush1.bf16.msra.mxu0 0
      %684 = vmatprep.subr.bf16.mxu0 0
      %685 = vmatpush1.bf16.msra.mxu0 0
      %686 = vmatprep.subr.bf16.mxu0 0
      %687 = vmatpush1.bf16.msra.mxu0 0
      %688 = vmatprep.subr.bf16.mxu0 0
      %689 = vmatpush1.bf16.msra.mxu0 0
      %690 = vmatprep.subr.bf16.mxu0 0
      %691 = vmatpush1.bf16.msra.mxu0 0
      %692 = vmatprep.subr.bf16.mxu0 0
      %693 = vmatpush1.bf16.msra.mxu0 0
      %694 = vmatprep.subr.bf16.mxu0 0
      %695 = vmatpush1.bf16.msra.mxu0 0
      %696 = vmatprep.subr.bf16.mxu0 0
      %697 = vmatpush1.bf16.msra.mxu0 0
      %698 = vmatprep.subr.bf16.mxu0 0
      %699 = vmatpush1.bf16.msra.mxu0 0
      %700 = vmatprep.subr.bf16.mxu0 0
      %701 = vmatpush1.bf16.msra.mxu0 0
      %702 = vmatprep.subr.bf16.mxu0 0
      %703 = vmatpush1.bf16.msra.mxu0 0
      %704 = vmatprep.mubr.bf16.mxu0 0
      %705 = vmatmul.mubr.bf16.gmra.mrb[0].mxu0 %v661
      %v706 = vpop.f32.mrb[0].mxu0
      %v707 = vadd.f32 %v602, %v706
      %v708 = vpop.f32.mrb[0].mxu0
      %v709 = vadd.f32 %v602, %v708
      %v710 = vpop.f32.mrb[0].mxu0
      %v711 = vadd.f32 %v607, %v710
      %v712 = vpop.f32.mrb[0].mxu0
      %v713 = vadd.f32 %v607, %v712
      %714 = vmatprep.mubr.bf16.mxu0 0
      %715 = vmatmul.mubr.bf16.gmra.mrb[0].mxu0 %v664
      %v716 = vpop.f32.mrb[0].mxu0
      %v717 = vadd.f32 %v612, %v716
      %v718 = vpop.f32.mrb[0].mxu0
      %v719 = vadd.f32 %v612, %v718
      %v720 = vpop.f32.mrb[0].mxu0
      %v721 = vadd.f32 %v617, %v720
      %v722 = vpop.f32.mrb[0].mxu0
      %v723 = vadd.f32 %v617, %v722
      %724 = vmatprep.mubr.bf16.mxu0 0
      %725 = vmatmul.mubr.bf16.gmra.mrb[0].mxu0 %v667
      %v726 = vpop.f32.mrb[0].mxu0
      %v727 = vadd.f32 %v622, %v726
      %v728 = vpop.f32.mrb[0].mxu0
      %v729 = vadd.f32 %v622, %v728
      %v730 = vpop.f32.mrb[0].mxu0
      %v731 = vadd.f32 %v627, %v730
      %v732 = vpop.f32.mrb[0].mxu0
      %v733 = vadd.f32 %v627, %v732
      %734 = vmatprep.mubr.bf16.mxu0 0
      %735 = vmatmul.mubr.bf16.gmra.mrb[0].mxu0 %v670
      %v736 = vpop.f32.mrb[0].mxu0
      %v737 = vadd.f32 %v632, %v736
      %v738 = vpop.f32.mrb[0].mxu0
      %v739 = vadd.f32 %v632, %v738
      %v740 = vpop.f32.mrb[0].mxu0
      %v741 = vadd.f32 %v637, %v740
      %v742 = vpop.f32.mrb[0].mxu0
      %v743 = vadd.f32 %v637, %v742
      %744 = vdwg.mxu0
      %745 = vmatprep.subr.bf16.mxu0 %v586
      %746 = vmatpush1.bf16.msra.mxu0 %v585
      %747 = vmatprep.subr.bf16.mxu0 %v594
      %748 = vmatpush1.bf16.msra.mxu0 %v593
      %749 = vmatprep.subr.bf16.mxu0 0
      %750 = vmatpush1.bf16.msra.mxu0 0
      %751 = vmatprep.subr.bf16.mxu0 0
      %752 = vmatpush1.bf16.msra.mxu0 0
      %753 = vmatprep.subr.bf16.mxu0 0
      %754 = vmatpush1.bf16.msra.mxu0 0
      %755 = vmatprep.subr.bf16.mxu0 0
      %756 = vmatpush1.bf16.msra.mxu0 0
      %757 = vmatprep.subr.bf16.mxu0 0
      %758 = vmatpush1.bf16.msra.mxu0 0
      %759 = vmatprep.subr.bf16.mxu0 0
      %760 = vmatpush1.bf16.msra.mxu0 0
      %761 = vmatprep.subr.bf16.mxu0 0
      %762 = vmatpush1.bf16.msra.mxu0 0
      %763 = vmatprep.subr.bf16.mxu0 0
      %764 = vmatpush1.bf16.msra.mxu0 0
      %765 = vmatprep.subr.bf16.mxu0 0
      %766 = vmatpush1.bf16.msra.mxu0 0
      %767 = vmatprep.subr.bf16.mxu0 0
      %768 = vmatpush1.bf16.msra.mxu0 0
      %769 = vmatprep.subr.bf16.mxu0 0
      %770 = vmatpush1.bf16.msra.mxu0 0
      %771 = vmatprep.subr.bf16.mxu0 0
      %772 = vmatpush1.bf16.msra.mxu0 0
      %773 = vmatprep.subr.bf16.mxu0 0
      %774 = vmatpush1.bf16.msra.mxu0 0
      %775 = vmatprep.subr.bf16.mxu0 0
      %776 = vmatpush1.bf16.msra.mxu0 0
      %777 = vmatprep.mubr.bf16.mxu0 0
      %778 = vmatmul.mubr.bf16.gmra.mrb[0].mxu0 %v661
      %v779 = vpop.f32.mrb[0].mxu0
      %v780 = vadd.f32 %v602, %v779
      %v781 = vpop.f32.mrb[0].mxu0
      %v782 = vadd.f32 %v602, %v781
      %v783 = vpop.f32.mrb[0].mxu0
      %v784 = vadd.f32 %v607, %v783
      %v785 = vpop.f32.mrb[0].mxu0
      %v786 = vadd.f32 %v607, %v785
      %787 = vmatprep.mubr.bf16.mxu0 0
      %788 = vmatmul.mubr.bf16.gmra.mrb[0].mxu0 %v664
      %v789 = vpop.f32.mrb[0].mxu0
      %v790 = vadd.f32 %v612, %v789
      %v791 = vpop.f32.mrb[0].mxu0
      %v792 = vadd.f32 %v612, %v791
      %v793 = vpop.f32.mrb[0].mxu0
      %v794 = vadd.f32 %v617, %v793
      %v795 = vpop.f32.mrb[0].mxu0
      %v796 = vadd.f32 %v617, %v795
      %797 = vmatprep.mubr.bf16.mxu0 0
      %798 = vmatmul.mubr.bf16.gmra.mrb[0].mxu0 %v667
      %v799 = vpop.f32.mrb[0].mxu0
      %v800 = vadd.f32 %v622, %v799
      %v801 = vpop.f32.mrb[0].mxu0
      %v802 = vadd.f32 %v622, %v801
      %v803 = vpop.f32.mrb[0].mxu0
      %v804 = vadd.f32 %v627, %v803
      %v805 = vpop.f32.mrb[0].mxu0
      %v806 = vadd.f32 %v627, %v805
      %807 = vmatprep.mubr.bf16.mxu0 0
      %808 = vmatmul.mubr.bf16.gmra.mrb[0].mxu0 %v670
      %v809 = vpop.f32.mrb[0].mxu0
      %v810 = vadd.f32 %v632, %v809
      %v811 = vpop.f32.mrb[0].mxu0
      %v812 = vadd.f32 %v632, %v811
      %v813 = vpop.f32.mrb[0].mxu0
      %v814 = vadd.f32 %v637, %v813
      %v815 = vpop.f32.mrb[0].mxu0
      %v816 = vadd.f32 %v637, %v815
      %817 = vdwg.mxu0
      %818 = vmatprep.subr.bf16.mxu0 %v588
      %819 = vmatpush1.bf16.msra.mxu0 %v587
      %820 = vmatprep.subr.bf16.mxu0 %v596
      %821 = vmatpush1.bf16.msra.mxu0 %v595
      %822 = vmatprep.subr.bf16.mxu0 0
      %823 = vmatpush1.bf16.msra.mxu0 0
      %824 = vmatprep.subr.bf16.mxu0 0
      %825 = vmatpush1.bf16.msra.mxu0 0
      %826 = vmatprep.subr.bf16.mxu0 0
      %827 = vmatpush1.bf16.msra.mxu0 0
      %828 = vmatprep.subr.bf16.mxu0 0
      %829 = vmatpush1.bf16.msra.mxu0 0
      %830 = vmatprep.subr.bf16.mxu0 0
      %831 = vmatpush1.bf16.msra.mxu0 0
      %832 = vmatprep.subr.bf16.mxu0 0
      %833 = vmatpush1.bf16.msra.mxu0 0
      %834 = vmatprep.subr.bf16.mxu0 0
      %835 = vmatpush1.bf16.msra.mxu0 0
      %836 = vmatprep.subr.bf16.mxu0 0
      %837 = vmatpush1.bf16.msra.mxu0 0
      %838 = vmatprep.subr.bf16.mxu0 0
      %839 = vmatpush1.bf16.msra.mxu0 0
      %840 = vmatprep.subr.bf16.mxu0 0
      %841 = vmatpush1.bf16.msra.mxu0 0
      %842 = vmatprep.subr.bf16.mxu0 0
      %843 = vmatpush1.bf16.msra.mxu0 0
      %844 = vmatprep.subr.bf16.mxu0 0
      %845 = vmatpush1.bf16.msra.mxu0 0
      %846 = vmatprep.subr.bf16.mxu0 0
      %847 = vmatpush1.bf16.msra.mxu0 0
      %848 = vmatprep.subr.bf16.mxu0 0
      %849 = vmatpush1.bf16.msra.mxu0 0
      %850 = vmatprep.mubr.bf16.mxu0 0
      %851 = vmatmul.mubr.bf16.gmra.mrb[0].mxu0 %v661
      %v852 = vpop.f32.mrb[0].mxu0
      %v853 = vadd.f32 %v602, %v852
      %v854 = vpop.f32.mrb[0].mxu0
      %v855 = vadd.f32 %v602, %v854
      %v856 = vpop.f32.mrb[0].mxu0
      %v857 = vadd.f32 %v607, %v856
      %v858 = vpop.f32.mrb[0].mxu0
      %v859 = vadd.f32 %v607, %v858
      %860 = vmatprep.mubr.bf16.mxu0 0
      %861 = vmatmul.mubr.bf16.gmra.mrb[0].mxu0 %v664
      %v862 = vpop.f32.mrb[0].mxu0
      %v863 = vadd.f32 %v612, %v862
      %v864 = vpop.f32.mrb[0].mxu0
      %v865 = vadd.f32 %v612, %v864
      %v866 = vpop.f32.mrb[0].mxu0
      %v867 = vadd.f32 %v617, %v866
      %v868 = vpop.f32.mrb[0].mxu0
      %v869 = vadd.f32 %v617, %v868
      %870 = vmatprep.mubr.bf16.mxu0 0
      %871 = vmatmul.mubr.bf16.gmra.mrb[0].mxu0 %v667
      %v872 = vpop.f32.mrb[0].mxu0
      %v873 = vadd.f32 %v622, %v872
      %v874 = vpop.f32.mrb[0].mxu0
      %v875 = vadd.f32 %v622, %v874
      %v876 = vpop.f32.mrb[0].mxu0
      %v877 = vadd.f32 %v627, %v876
      %v878 = vpop.f32.mrb[0].mxu0
      %v879 = vadd.f32 %v627, %v878
      %880 = vmatprep.mubr.bf16.mxu0 0
      %881 = vmatmul.mubr.bf16.gmra.mrb[0].mxu0 %v670
      %v882 = vpop.f32.mrb[0].mxu0
      %v883 = vadd.f32 %v632, %v882
      %v884 = vpop.f32.mrb[0].mxu0
      %v885 = vadd.f32 %v632, %v884
      %v886 = vpop.f32.mrb[0].mxu0
      %v887 = vadd.f32 %v637, %v886
      %v888 = vpop.f32.mrb[0].mxu0
      %v889 = vadd.f32 %v637, %v888
      %890 = vdwg.mxu0
      %891 = vmatprep.subr.bf16.mxu0 %v590
      %892 = vmatpush1.bf16.msra.mxu0 %v589
      %893 = vmatprep.subr.bf16.mxu0 %v598
      %894 = vmatpush1.bf16.msra.mxu0 %v597
      %895 = vmatprep.subr.bf16.mxu0 0
      %896 = vmatpush1.bf16.msra.mxu0 0
      %897 = vmatprep.subr.bf16.mxu0 0
      %898 = vmatpush1.bf16.msra.mxu0 0
      %899 = vmatprep.subr.bf16.mxu0 0
      %900 = vmatpush1.bf16.msra.mxu0 0
      %901 = vmatprep.subr.bf16.mxu0 0
      %902 = vmatpush1.bf16.msra.mxu0 0
      %903 = vmatprep.subr.bf16.mxu0 0
      %904 = vmatpush1.bf16.msra.mxu0 0
      %905 = vmatprep.subr.bf16.mxu0 0
      %906 = vmatpush1.bf16.msra.mxu0 0
      %907 = vmatprep.subr.bf16.mxu0 0
      %908 = vmatpush1.bf16.msra.mxu0 0
      %909 = vmatprep.subr.bf16.mxu0 0
      %910 = vmatpush1.bf16.msra.mxu0 0
      %911 = vmatprep.subr.bf16.mxu0 0
      %912 = vmatpush1.bf16.msra.mxu0 0
      %913 = vmatprep.subr.bf16.mxu0 0
      %914 = vmatpush1.bf16.msra.mxu0 0
      %915 = vmatprep.subr.bf16.mxu0 0
      %916 = vmatpush1.bf16.msra.mxu0 0
      %917 = vmatprep.subr.bf16.mxu0 0
      %918 = vmatpush1.bf16.msra.mxu0 0
      %919 = vmatprep.subr.bf16.mxu0 0
      %920 = vmatpush1.bf16.msra.mxu0 0
      %921 = vmatprep.subr.bf16.mxu0 0
      %922 = vmatpush1.bf16.msra.mxu0 0
      %923 = vmatprep.mubr.bf16.mxu0 0
      %924 = vmatmul.mubr.bf16.gmra.mrb[0].mxu0 %v661
      %v925 = vpop.f32.mrb[0].mxu0
      %v926 = vadd.f32 %v602, %v925
      %v927 = vpop.f32.mrb[0].mxu0
      %v928 = vadd.f32 %v602, %v927
      %v929 = vpop.f32.mrb[0].mxu0
      %v930 = vadd.f32 %v607, %v929
      %v931 = vpop.f32.mrb[0].mxu0
      %v932 = vadd.f32 %v607, %v931
      %933 = vmatprep.mubr.bf16.mxu0 0
      %934 = vmatmul.mubr.bf16.gmra.mrb[0].mxu0 %v664
      %v935 = vpop.f32.mrb[0].mxu0
      %v936 = vadd.f32 %v612, %v935
      %v937 = vpop.f32.mrb[0].mxu0
      %v938 = vadd.f32 %v612, %v937
      %v939 = vpop.f32.mrb[0].mxu0
      %v940 = vadd.f32 %v617, %v939
      %v941 = vpop.f32.mrb[0].mxu0
      %v942 = vadd.f32 %v617, %v941
      %943 = vmatprep.mubr.bf16.mxu0 0
      %944 = vmatmul.mubr.bf16.gmra.mrb[0].mxu0 %v667
      %v945 = vpop.f32.mrb[0].mxu0
      %v946 = vadd.f32 %v622, %v945
      %v947 = vpop.f32.mrb[0].mxu0
      %v948 = vadd.f32 %v622, %v947
      %v949 = vpop.f32.mrb[0].mxu0
      %v950 = vadd.f32 %v627, %v949
      %v951 = vpop.f32.mrb[0].mxu0
      %v952 = vadd.f32 %v627, %v951
      %953 = vmatprep.mubr.bf16.mxu0 0
      %954 = vmatmul.mubr.bf16.gmra.mrb[0].mxu0 %v670
      %v955 = vpop.f32.mrb[0].mxu0
      %v956 = vadd.f32 %v632, %v955
      %v957 = vpop.f32.mrb[0].mxu0
      %v958 = vadd.f32 %v632, %v957
      %v959 = vpop.f32.mrb[0].mxu0
      %v960 = vadd.f32 %v637, %v959
      %v961 = vpop.f32.mrb[0].mxu0
      %v962 = vadd.f32 %v637, %v961
      %963 = vdwg.mxu0
      %v964 = vmax.f32 %v707, 0.0
      %v965 = vmax.f32 %v709, 0.0
      %v966 = vmax.f32 %v780, 0.0
      %v967 = vmax.f32 %v782, 0.0
      %v968 = vmax.f32 %v853, 0.0
      %v969 = vmax.f32 %v855, 0.0
      %v970 = vmax.f32 %v926, 0.0
      %v971 = vmax.f32 %v928, 0.0
      %v972 = vmax.f32 %v711, 0.0
      %v973 = vmax.f32 %v713, 0.0
      %v974 = vmax.f32 %v784, 0.0
      %v975 = vmax.f32 %v786, 0.0
      %v976 = vmax.f32 %v857, 0.0
      %v977 = vmax.f32 %v859, 0.0
      %v978 = vmax.f32 %v930, 0.0
      %v979 = vmax.f32 %v932, 0.0
      %v980 = vmax.f32 %v717, 0.0
      %v981 = vmax.f32 %v719, 0.0
      %v982 = vmax.f32 %v790, 0.0
      %v983 = vmax.f32 %v792, 0.0
      %v984 = vmax.f32 %v863, 0.0
      %v985 = vmax.f32 %v865, 0.0
      %v986 = vmax.f32 %v936, 0.0
      %v987 = vmax.f32 %v938, 0.0
      %v988 = vmax.f32 %v721, 0.0
      %v989 = vmax.f32 %v723, 0.0
      %v990 = vmax.f32 %v794, 0.0
      %v991 = vmax.f32 %v796, 0.0
      %v992 = vmax.f32 %v867, 0.0
      %v993 = vmax.f32 %v869, 0.0
      %v994 = vmax.f32 %v940, 0.0
      %v995 = vmax.f32 %v942, 0.0
      %v996 = vmax.f32 %v727, 0.0
      %v997 = vmax.f32 %v729, 0.0
      %v998 = vmax.f32 %v800, 0.0
      %v999 = vmax.f32 %v802, 0.0
      %v1000 = vmax.f32 %v873, 0.0
      %v1001 = vmax.f32 %v875, 0.0
      %v1002 = vmax.f32 %v946, 0.0
      %v1003 = vmax.f32 %v948, 0.0
      %v1004 = vmax.f32 %v731, 0.0
      %v1005 = vmax.f32 %v733, 0.0
      %v1006 = vmax.f32 %v804, 0.0
      %v1007 = vmax.f32 %v806, 0.0
      %v1008 = vmax.f32 %v877, 0.0
      %v1009 = vmax.f32 %v879, 0.0
      %v1010 = vmax.f32 %v950, 0.0
      %v1011 = vmax.f32 %v952, 0.0
      %v1012 = vmax.f32 %v737, 0.0
      %v1013 = vmax.f32 %v739, 0.0
      %v1014 = vmax.f32 %v810, 0.0
      %v1015 = vmax.f32 %v812, 0.0
      %v1016 = vmax.f32 %v883, 0.0
      %v1017 = vmax.f32 %v885, 0.0
      %v1018 = vmax.f32 %v956, 0.0
      %v1019 = vmax.f32 %v958, 0.0
      %v1020 = vmax.f32 %v741, 0.0
      %v1021 = vmax.f32 %v743, 0.0
      %v1022 = vmax.f32 %v814, 0.0
      %v1023 = vmax.f32 %v816, 0.0
      %v1024 = vmax.f32 %v887, 0.0
      %v1025 = vmax.f32 %v889, 0.0
      %v1026 = vmax.f32 %v960, 0.0
      %v1027 = vmax.f32 %v962, 0.0
      %v1028 = vmax.f32 %v964, %v965
      %v1029 = vmax.f32 %v972, %v973
      %v1030 = vmax.f32 %v980, %v981
      %v1031 = vmax.f32 %v988, %v989
      %v1032 = vmax.f32 %v996, %v997
      %v1033 = vmax.f32 %v1004, %v1005
      %v1034 = vmax.f32 %v1012, %v1013
      %v1035 = vmax.f32 %v1020, %v1021
      %v1036 = vmax.f32 %v1028, %v966
      %v1037 = vmax.f32 %v1029, %v974
      %v1038 = vmax.f32 %v1030, %v982
      %v1039 = vmax.f32 %v1031, %v990
      %v1040 = vmax.f32 %v1032, %v998
      %v1041 = vmax.f32 %v1033, %v1006
      %v1042 = vmax.f32 %v1034, %v1014
      %v1043 = vmax.f32 %v1035, %v1022
      %v1044 = vmax.f32 %v1036, %v967
      %v1045 = vmax.f32 %v1037, %v975
      %v1046 = vmax.f32 %v1038, %v983
      %v1047 = vmax.f32 %v1039, %v991
      %v1048 = vmax.f32 %v1040, %v999
      %v1049 = vmax.f32 %v1041, %v1007
      %v1050 = vmax.f32 %v1042, %v1015
      %v1051 = vmax.f32 %v1043, %v1023
      %v1052 = vmax.f32 %v1044, %v968
      %v1053 = vmax.f32 %v1045, %v976
      %v1054 = vmax.f32 %v1046, %v984
      %v1055 = vmax.f32 %v1047, %v992
      %v1056 = vmax.f32 %v1048, %v1000
      %v1057 = vmax.f32 %v1049, %v1008
      %v1058 = vmax.f32 %v1050, %v1016
      %v1059 = vmax.f32 %v1051, %v1024
      %v1060 = vmax.f32 %v1052, %v969
      %v1061 = vmax.f32 %v1053, %v977
      %v1062 = vmax.f32 %v1054, %v985
      %v1063 = vmax.f32 %v1055, %v993
      %v1064 = vmax.f32 %v1056, %v1001
      %v1065 = vmax.f32 %v1057, %v1009
      %v1066 = vmax.f32 %v1058, %v1017
      %v1067 = vmax.f32 %v1059, %v1025
      %v1068 = vmax.f32 %v1060, %v970
      %v1069 = vmax.f32 %v1061, %v978
      %v1070 = vmax.f32 %v1062, %v986
      %v1071 = vmax.f32 %v1063, %v994
      %v1072 = vmax.f32 %v1064, %v1002
      %v1073 = vmax.f32 %v1065, %v1010
      %v1074 = vmax.f32 %v1066, %v1018
      %v1075 = vmax.f32 %v1067, %v1026
      %v1076 = vmax.f32 %v1068, %v971
      %v1077 = vmax.f32 %v1069, %v979
      %v1078 = vmax.f32 %v1070, %v987
      %v1079 = vmax.f32 %v1071, %v995
      %v1080 = vmax.f32 %v1072, %v1003
      %v1081 = vmax.f32 %v1073, %v1011
      %v1082 = vmax.f32 %v1074, %v1019
      %v1083 = vmax.f32 %v1075, %v1027
      %1084 = vst [vmem:[%s228] sm:$0xff] %v1076
      %1085 = vst [vmem:[%s228 + $0x8] sm:$0xff] %v1077
      %1086 = vst [vmem:[%s228 + $0x10] sm:$0xff] %v1078
      %1087 = vst [vmem:[%s228 + $0x18] sm:$0xff] %v1079
      %1088 = vst [vmem:[%s228 + $0x20] sm:$0xff] %v1080
      %1089 = vst [vmem:[%s228 + $0x28] sm:$0xff] %v1081
      %1090 = vst [vmem:[%s228 + $0x30] sm:$0xff] %v1082
      %1091 = vst [vmem:[%s228 + $0x38] sm:$0xff] %v1083
      %p1092 = scmp.lt.s32.totalorder %s19, 1
      %s1093 = scalar_select %p1092, %s19, 1
      %p1094 = scmp.lt.s32.totalorder %s20, 0
      %s1095 = scalar_select %p1094, %s20, 0
      %s1096 = smul.addr %s1093, 8
      %s1097 = sadd.s32 %s1095, %s1096
      %s1098 = smul.addr %s1097, 8
      %s1099 = scalar_lea.vmem %s4, %s1098
      // Predicated region
      $region37: #{pointnet_sa_module_forward.1} parent=35 // pred_check
        %p1100 = pneg %p138
      $region38: #{pointnet_sa_module_forward.1} parent=35 // pred_check_branch
        %1102 = sbr.rel (%p1100) target = $region40
      $region39: #{pointnet_sa_module_forward.1} parent=35 // pred_region
        _
      $region40: #{pointnet_sa_module_forward.1} parent=35 // pred_fallthru
        _
    $region36: #{pointnet_sa_module_forward.1} parent=5 // pred_fallthru
      _
    %p1103 = scmp.le.s32.totalorder 2, %s10
    // Predicated region
    $region41: #{pointnet_sa_module_forward.1} parent=5 // pred_check
      %p1104 = pneg %p1103
    $region42: #{pointnet_sa_module_forward.1} parent=5 // pred_check_branch
      %1106 = sbr.rel (%p1104) target = $region44
    $region43: #{pointnet_sa_module_forward.1} parent=5 // pred_region
      %s1107 = ssub.s32 %s10, 2
      // Predicated region
      $region45: #{pointnet_sa_module_forward.1} parent=43 // pred_check
        %p1108 = pneg %p144
      $region46: #{pointnet_sa_module_forward.1} parent=43 // pred_check_branch
        %1110 = sbr.rel (%p1108) target = $region48
      $region47: #{pointnet_sa_module_forward.1} parent=43 // pred_region
        %p1111 = scmp.lt.s32.totalorder %s21, 1
        %s1112 = scalar_select %p1111, %s21, 1
        %p1113 = scmp.lt.s32.totalorder %s22, 0
        %s1114 = scalar_select %p1113, %s22, 0
        %s1115 = smul.addr %s1112, 8
        %s1116 = sadd.s32 %s1114, %s1115
        %s1117 = smul.addr %s1116, 8
        %s1118 = scalar_lea.vmem %s4, %s1117
      $region48: #{pointnet_sa_module_forward.1} parent=43 // pred_fallthru
        _
    $region44: #{pointnet_sa_module_forward.1} parent=5 // pred_fallthru
      _
  $region6: #{pointnet_sa_module_forward.1} parent=0 // loop_footer
    %s14 = sadd.s32 1, %s10
  $region7: #{pointnet_sa_module_forward.1} parent=0 // loop_footer_branch
    %9 = sbr.rel target = $region3
  $region8: #{pointnet_sa_module_forward.1} parent=0 // loop_exit
    _

</llo_original>
